<compile_context>
chip_gen: v7x
topology: tpu7x:2x2x1
jax: 0.10.0
libtpu: 0.0.40
codegen_flags: <defaults>
</compile_context>

<pallas_src>
import functools

import jax
import jax.numpy as jnp
from jax.experimental import pallas as pl
from jax.experimental.pallas import tpu as pltpu

_LANE = 128


def _round_up(v, m):
    return -(-v // m) * m


def _cat_fused_kernel(x_ref, prev_ref, a_ref, b_ref, bias_ref, o_ref):
    # x_ref:    (1, Cin,  tv)   lane-dense voxel tile of the input
    # prev_ref: (1, Cout, tv)   lane-dense voxel tile of the skip connection
    # a_ref:    (Cout, Cin)     fused weight acting on x   (activation dtype)
    # b_ref:    (Cout, Cout)    fused weight acting on prev (activation dtype)
    # bias_ref: (Cout, 1)       fused bias (f32)
    # o_ref:    (1, Cout, tv)
    #
    # No `.astype(f32)` on the activation tiles: the MXU consumes bf16/f32
    # natively with f32 accumulation, so widening would only burn VPU cycles
    # and double the operand VMEM footprint.
    out = (jnp.dot(a_ref[...], x_ref[0], preferred_element_type=jnp.float32)
           + jnp.dot(b_ref[...], prev_ref[0], preferred_element_type=jnp.float32)
           + bias_ref[...])                       # (Cout, tv) f32
    o_ref[0] = out.astype(o_ref.dtype)


def _choose_voxel_tile(s, cap):
    """Largest lane-dense tile <= cap; prefer one that evenly divides S."""
    cap = max(_LANE, (cap // _LANE) * _LANE)
    if s <= cap:
        return s                                   # full-extent block
    if s % _LANE == 0:
        nb = s // _LANE
        # Only accept an exact divisor if it keeps the tile >= cap/2,
        # otherwise a single masked final step is cheaper than tiny tiles.
        lo = max(cap // (2 * _LANE), 1)
        for cand in range(cap // _LANE, lo - 1, -1):
            if nb % cand == 0:
                return cand * _LANE
    return cap


@functools.partial(jax.jit, static_argnames=("tm_vox",))
def cat_forward(x, prev, params, *, tm_vox=None):
    """x: (N, Cin, D, H, W), prev: (N, Cout, D, H, W) -> (N, Cout, D, H, W)."""
    n, cin, d, h, w = x.shape
    cout = params["w1"].shape[0]
    assert prev.shape == (n, cout, d, h, w)
    s = d * h * w

    act_dtype = x.dtype
    itemsize = jnp.dtype(act_dtype).itemsize

    # Free reshapes (contiguous NCDHW -> (N, C, S)); no transpose needed.
    x_m = x.reshape(n, cin, s)
    prev_m = prev.reshape(n, cout, s).astype(act_dtype)

    # ---- fold the three 1x1x1 convs into two matrices + one bias (f32) ----
    f32 = jnp.float32
    w1 = params["w1"].reshape(cout, cin).astype(f32)        # Conv3d   (out, in)
    w2 = params["w2"].reshape(cout, cout).astype(f32)       # ConvT3d  (in, out)
    w3 = params["w3"].reshape(cout, 2 * cout).astype(f32)   # Conv3d   (out, 2*out)
    b1 = params["b1"].astype(f32)
    b2 = params["b2"].astype(f32)
    b3 = params["b3"].astype(f32)

    w3p = w3[:, :cout]          # acts on the `prev` half of the concat
    w3y = w3[:, cout:]          # acts on the `y`    half of the concat

    a_x = (w3y @ (w2.T @ w1)).astype(act_dtype)               # (Cout, Cin)
    a_p = w3p.astype(act_dtype)                                # (Cout, Cout)
    bias = (w3y @ (w2.T @ b1 + b2) + b3).reshape(cout, 1)      # (Cout, 1) f32

    # ---- voxel tile: big enough to bury the ~0.35us per-step overhead, ----
    # ---- small enough to fit double-buffered in scoped VMEM on all chips --
    sub = max(8, 32 // itemsize)                 # sublane packing (8 f32 / 16 bf16)
    cin_p = _round_up(cin, sub)
    cout_p = _round_up(cout, sub)
    # bytes/voxel: double-buffered x+prev+out tiles + f32 accumulator temps
    per_vox = 2 * ((cin_p + cout_p) * itemsize + cout_p * itemsize) + 2 * cout_p * 4
    if tm_vox is None:
        budget = 16 << 20                        # data-tile budget, all chips
        ceiling = 65536 if itemsize >= 4 else 131072
        cap = min(ceiling, max(_LANE, (budget // per_vox) // _LANE * _LANE))
    else:
        cap = tm_vox
    tv = _choose_voxel_tile(s, cap)
    assert s <= tv or tv % _LANE == 0, "voxel tile must be a multiple of 128"
    grid = (n, pl.cdiv(s, tv))

    # Explicit VMEM limit: above the 16 MiB v5e scoped default when needed,
    # well under v7x's 64 MiB physical VMEM.
    est = per_vox * tv + 2 * (cout_p * (cin_p + cout_p) * itemsize + cout_p * 4 * _LANE)
    vmem_limit_bytes = int(min(max(2 * est, 32 << 20), 56 << 20))

    cost = pl.CostEstimate(
        flops=2 * n * s * (cin * cout + cout * cout),
        transcendentals=0,
        bytes_accessed=n * s * (cin + 2 * cout) * itemsize,
    )

    out = pl.pallas_call(
        _cat_fused_kernel,
        out_shape=jax.ShapeDtypeStruct((n, cout, s), act_dtype),
        grid_spec=pltpu.PrefetchScalarGridSpec(
            num_scalar_prefetch=0,
            grid=grid,
            in_specs=[
                pl.BlockSpec((1, cin, tv), lambda b, v: (b, 0, v)),    # x tile
                pl.BlockSpec((1, cout, tv), lambda b, v: (b, 0, v)),   # prev tile
                pl.BlockSpec((cout, cin), lambda b, v: (0, 0)),        # A (resident)
                pl.BlockSpec((cout, cout), lambda b, v: (0, 0)),       # B (resident)
                pl.BlockSpec((cout, 1), lambda b, v: (0, 0)),          # bias
            ],
            out_specs=pl.BlockSpec((1, cout, tv), lambda b, v: (b, 0, v)),
        ),
        compiler_params=pltpu.CompilerParams(
            dimension_semantics=("parallel", "parallel"),
            vmem_limit_bytes=vmem_limit_bytes),
        cost_estimate=cost,
    )(x_m, prev_m, a_x, a_p, bias)

    return out.reshape(n, cout, d, h, w)


def init_params(key, in_channels, out_channels, dtype=jnp.float32):
    k = jax.random.split(key, 6)
    # Conv3d weight:          (out, in, 1, 1, 1)
    # ConvTranspose3d weight: (in, out, 1, 1, 1)  -- here in == out == out_channels
    return {
        "w1": 0.1 * jax.random.normal(k[0], (out_channels, in_channels, 1, 1, 1), dtype),
        "b1": 0.1 * jax.random.normal(k[1], (out_channels,), dtype),
        "w2": 0.1 * jax.random.normal(k[2], (out_channels, out_channels, 1, 1, 1), dtype),
        "b2": 0.1 * jax.random.normal(k[3], (out_channels,), dtype),
        "w3": 0.1 * jax.random.normal(k[4], (out_channels, 2 * out_channels, 1, 1, 1), dtype),
        "b3": 0.1 * jax.random.normal(k[5], (out_channels,), dtype),
    }


def cat_reference(x, prev, params):
    """Pure-JAX reference (identical math to the PyTorch module)."""
    cout, cin = params["w1"].shape[:2]
    w1 = params["w1"].reshape(cout, cin)
    w2 = params["w2"].reshape(cout, cout)
    w3 = params["w3"].reshape(cout, 2 * cout)
    x1 = jnp.einsum("ncdhw,oc->nodhw", x, w1) + params["b1"][None, :, None, None, None]
    y = jnp.einsum("ncdhw,co->nodhw", x1, w2) + params["b2"][None, :, None, None, None]
    cat = jnp.concatenate([prev, y], axis=1)
    out = jnp.einsum("ncdhw,oc->nodhw", cat, w3) + params["b3"][None, :, None, None, None]
    return out


if __name__ == "__main__":
    key = jax.random.PRNGKey(0)
    kx, kp, kw = jax.random.split(key, 3)

    N, CIN, COUT = 2, 4, 8
    params = init_params(kw, CIN, COUT)

    # Test 1: small spatial volume (single full-extent voxel tile per batch).
    D, H, W = 4, 4, 4
    x = jax.random.normal(kx, (N, CIN, D, H, W), jnp.float32)
    prev = jax.random.normal(kp, (N, COUT, D, H, W), jnp.float32)
    out = jax.block_until_ready(cat_forward(x, prev, params))
    ref = cat_reference(x, prev, params)
    assert out.shape == (N, COUT, D, H, W)
    assert jnp.max(jnp.abs(out - ref)) < 1e-4, "mismatch vs reference (test 1)"

    # Test 2: multi-tile voxel grid (S = 512, tile = 128 -> 4 tiles per batch).
    D2 = H2 = W2 = 8
    x2 = jax.random.normal(kx, (N, CIN, D2, H2, W2), jnp.float32)
    prev2 = jax.random.normal(kp, (N, COUT, D2, H2, W2), jnp.float32)
    out2 = jax.block_until_ready(cat_forward(x2, prev2, params, tm_vox=128))
    ref2 = cat_reference(x2, prev2, params)
    assert jnp.max(jnp.abs(out2 - ref2)) < 1e-4, "mismatch vs reference (test 2)"

    # Test 3: larger volume with adaptive (large) tile.
    D3, H3, W3 = 8, 16, 16   # S = 2048
    x3 = jax.random.normal(kx, (N, CIN, D3, H3, W3), jnp.float32)
    prev3 = jax.random.normal(kp, (N, COUT, D3, H3, W3), jnp.float32)
    out3 = jax.block_until_ready(cat_forward(x3, prev3, params))
    ref3 = cat_reference(x3, prev3, params)
    assert jnp.max(jnp.abs(out3 - ref3)) < 1e-4, "mismatch vs reference (test 3)"

    # Test 4: bf16 activation traffic (bf16 MXU operands, f32 accumulation).
    xb = x3.astype(jnp.bfloat16)
    pb = prev3.astype(jnp.bfloat16)
    outb = jax.block_until_ready(cat_forward(xb, pb, params))
    refb = cat_reference(xb.astype(jnp.float32), pb.astype(jnp.float32), params)
    assert jnp.max(jnp.abs(outb.astype(jnp.float32) - refb)) < 5e-2, \
        "mismatch vs reference (test 4, bf16)"

    print("KERNEL_OK")
</pallas_src>

<mosaic_0001>
module attributes {stable_mosaic.version = 11 : i64} {
  func.func @_cat_fused_kernel(%arg0: i32, %arg1: i32, %arg2: memref<1x4x64xf32, #tpu.memory_space<vmem>>, %arg3: memref<1x8x64xf32, #tpu.memory_space<vmem>>, %arg4: memref<8x4xf32, #tpu.memory_space<vmem>>, %arg5: memref<8x8xf32, #tpu.memory_space<vmem>>, %arg6: memref<8x1xf32, #tpu.memory_space<vmem>>, %arg7: memref<1x8x64xf32, #tpu.memory_space<vmem>>) attributes {dimension_semantics = [#tpu.dimension_semantics<parallel>, #tpu.dimension_semantics<parallel>], iteration_bounds = array<i64: 2, 1>, scalar_prefetch = 0 : i64, scratch_operands = 0 : i64, tpu.core_type = #tpu.core_type<tc>, window_params = [{transform_indices = @transform_0, window_bounds = array<i64: 1, 4, 64>}, {transform_indices = @transform_1, window_bounds = array<i64: 1, 8, 64>}, {pipeline_mode = #tpu.pipeline_mode<synchronous>, transform_indices = @transform_2, window_bounds = array<i64: 8, 4>}, {pipeline_mode = #tpu.pipeline_mode<synchronous>, transform_indices = @transform_3, window_bounds = array<i64: 8, 8>}, {pipeline_mode = #tpu.pipeline_mode<synchronous>, transform_indices = @transform_4, window_bounds = array<i64: 8, 1>}, {transform_indices = @transform_5, window_bounds = array<i64: 1, 8, 64>}]} {
    %c0 = arith.constant 0 : index
    %c0_0 = arith.constant 0 : index
    %0 = vector.load %arg4[%c0, %c0_0] : memref<8x4xf32, #tpu.memory_space<vmem>>, vector<8x4xf32>
    %c0_1 = arith.constant 0 : index
    %c0_2 = arith.constant 0 : index
    %c0_3 = arith.constant 0 : index
    %1 = vector.load %arg2[%c0_1, %c0_2, %c0_3] : memref<1x4x64xf32, #tpu.memory_space<vmem>>, vector<1x4x64xf32>
    %2 = vector.shape_cast %1 : vector<1x4x64xf32> to vector<4x64xf32>
    %cst = arith.constant dense<0.000000e+00> : vector<8x64xf32>
    %3 = tpu.matmul %0, %2, %cst {dimension_numbers = #tpu.dot_dimension_numbers<[1], [0], [0], [1], [0, 0, 1, 1], [], []>} : vector<8x4xf32>, vector<4x64xf32>, vector<8x64xf32> -> vector<8x64xf32>
    %c0_4 = arith.constant 0 : index
    %c0_5 = arith.constant 0 : index
    %4 = vector.load %arg5[%c0_4, %c0_5] : memref<8x8xf32, #tpu.memory_space<vmem>>, vector<8x8xf32>
    %c0_6 = arith.constant 0 : index
    %c0_7 = arith.constant 0 : index
    %c0_8 = arith.constant 0 : index
    %5 = vector.load %arg3[%c0_6, %c0_7, %c0_8] : memref<1x8x64xf32, #tpu.memory_space<vmem>>, vector<1x8x64xf32>
    %6 = vector.shape_cast %5 : vector<1x8x64xf32> to vector<8x64xf32>
    %cst_9 = arith.constant dense<0.000000e+00> : vector<8x64xf32>
    %7 = tpu.matmul %4, %6, %cst_9 {dimension_numbers = #tpu.dot_dimension_numbers<[1], [0], [0], [1], [0, 0, 1, 1], [], []>} : vector<8x8xf32>, vector<8x64xf32>, vector<8x64xf32> -> vector<8x64xf32>
    %8 = arith.addf %3, %7 : vector<8x64xf32>
    %c0_10 = arith.constant 0 : index
    %c0_11 = arith.constant 0 : index
    %9 = vector.load %arg6[%c0_10, %c0_11] : memref<8x1xf32, #tpu.memory_space<vmem>>, vector<8x1xf32>
    %10 = vector.broadcast %9 : vector<8x1xf32> to vector<8x64xf32>
    %11 = arith.addf %8, %10 : vector<8x64xf32>
    %c0_12 = arith.constant 0 : index
    %c0_13 = arith.constant 0 : index
    %c0_14 = arith.constant 0 : index
    %12 = vector.load %arg7[%c0_12, %c0_13, %c0_14] : memref<1x8x64xf32, #tpu.memory_space<vmem>>, vector<1x8x64xf32>
    %13 = vector.shape_cast %12 : vector<1x8x64xf32> to vector<8x64xf32>
    %14 = vector.shape_cast %11 : vector<8x64xf32> to vector<1x8x64xf32>
    tpu.vector_store %arg7[%c0_12, %c0_13, %c0_14], %14 {strides = array<i32>} : memref<1x8x64xf32, #tpu.memory_space<vmem>>, vector<1x8x64xf32>,
    return
  }
  func.func @transform_0(%arg0: i32, %arg1: i32) -> (i32, i32, i32) {
    %c0_i32 = arith.constant 0 : i32
    %c0_i32_0 = arith.constant 0 : i32
    return %arg0, %c0_i32, %arg1 : i32, i32, i32
  }
  func.func @transform_1(%arg0: i32, %arg1: i32) -> (i32, i32, i32) {
    %c0_i32 = arith.constant 0 : i32
    %c0_i32_0 = arith.constant 0 : i32
    return %arg0, %c0_i32, %arg1 : i32, i32, i32
  }
  func.func @transform_2(%arg0: i32, %arg1: i32) -> (i32, i32) {
    %c0_i32 = arith.constant 0 : i32
    %c0_i32_0 = arith.constant 0 : i32
    %c0_i32_1 = arith.constant 0 : i32
    return %c0_i32, %c0_i32_0 : i32, i32
  }
  func.func @transform_3(%arg0: i32, %arg1: i32) -> (i32, i32) {
    %c0_i32 = arith.constant 0 : i32
    %c0_i32_0 = arith.constant 0 : i32
    %c0_i32_1 = arith.constant 0 : i32
    return %c0_i32, %c0_i32_0 : i32, i32
  }
  func.func @transform_4(%arg0: i32, %arg1: i32) -> (i32, i32) {
    %c0_i32 = arith.constant 0 : i32
    %c0_i32_0 = arith.constant 0 : i32
    %c0_i32_1 = arith.constant 0 : i32
    return %c0_i32, %c0_i32_0 : i32, i32
  }
  func.func @transform_5(%arg0: i32, %arg1: i32) -> (i32, i32, i32) {
    %c0_i32 = arith.constant 0 : i32
    %c0_i32_0 = arith.constant 0 : i32
    return %arg0, %c0_i32, %arg1 : i32, i32, i32
  }
}

</mosaic_0001>

<llo_original>
// kernel: cat_forward.1
$region0: #{cat_forward.1}
  #allocation0 [shape = 'u32[]', space=smem, size = 0x4, offset = 0x4, fixed_abs, tag = 'smem constant byte address 0x4 - core index']
  #allocation1 [shape = 'u32[144,128]{1,0:T(1,128)}', space=vmem, size = 0x12000, scoped, tag = 'internal scratch']
  %s0 = inlined_call_operand.vmem [shape: f32[2,4,64], index: 0, kind: input, shape index: {}]
  %s1 = inlined_call_operand.vmem [shape: f32[2,8,64], index: 1, kind: input, shape index: {}]
  %s2 = inlined_call_operand.vmem [shape: f32[8,4], index: 2, kind: input, shape index: {}]
  %s3 = inlined_call_operand.vmem [shape: f32[8,8], index: 3, kind: input, shape index: {}]
  %s4 = inlined_call_operand.vmem [shape: f32[8,1], index: 4, kind: input, shape index: {}]
  %s5 = inlined_call_operand.vmem [shape: f32[2,8,64], index: 5, kind: output, shape index: {}]
  %s6 = sld [smem:[#allocation0]]
  $region53: #{cat_forward.1} parent=0
    _
  %s8 = ssub.s32 1, %s6
  %s9 = scalar_select 0, %s8, %s6
  loop: start=0, step=1, limit=4
  $region2: #{cat_forward.1} parent=0 // loop_pre_header
    _
  $region3: #{cat_forward.1} parent=0 // loop_header
    %s11 = sphi 0, %s15
    %p12 = scmp.ge.s32.totalorder %s11, 4
    %s18 = sphi 0, %s30
    %s19 = sphi 0, %s26
    %s20 = sphi 0, %s18
    %s21 = sphi 0, %s19
    %s22 = sphi 0, %s20
    %s23 = sphi 0, %s21
    %s35 = sphi 0, %s37
    %s38 = sphi 0, %s35
    %s39 = sphi 0, %s38
    %s55 = sphi 0, %s39
    %s63 = sphi 0, %s65
    %s66 = sphi 0, %s63
    %s67 = sphi 0, %s66
    %s83 = sphi 0, %s67
    %s87 = sphi 0, %s87
    %s89 = sphi 0, %s87
    %s90 = sphi 0, %s89
    %s104 = sphi 0, %s90
    %s108 = sphi 0, %s108
    %s110 = sphi 0, %s108
    %s111 = sphi 0, %s110
    %s125 = sphi 0, %s111
    %s129 = sphi 0, %s129
    %s131 = sphi 0, %s129
    %s132 = sphi 0, %s131
    %s146 = sphi 0, %s132
    %s154 = sphi 0, %s156
    %s157 = sphi 0, %s154
    %s158 = sphi 0, %s157
    %s174 = sphi 0, %s158
  $region4: #{cat_forward.1} parent=0 // loop_header_branch
    %14 = sbr.rel (%p12) target = $region8
  $region5: #{cat_forward.1} parent=0 // loop_body
    %s16 = ssub.s32 %s11, 1
    %s17 = ssub.s32 %s11, 2
    %s24 = sadd.s32 1, %s19
    %p25 = scmp.ge.s32.totalorder %s24, 1
    %s26 = scalar_select %p25, 0, %s24
    %s27 = sadd.s32 1, %s18
    %s28 = scalar_select %p25, %s27, %s18
    %p29 = scmp.ge.s32.totalorder %s28, 2
    %s30 = scalar_select %p29, 0, %s28
    %s31 = ssub.s32 %s18, %s30
    %s32 = ssub.s32 %s19, %s26
    %s33 = sor.u32 %s31, %s32
    %p34 = scmp.eq.s32.totalorder %s33, 0
    %s36 = sadd.s32 %s35, 1
    %s37 = scalar_select %p34, %s35, %s36
    %p40 = pneg %p34
    %p41 = scmp.eq.s32.totalorder %s11, 1
    %p42 = por %p40, %p41
    %p43 = scmp.ne.s32.totalorder %s35, %s38
    %p44 = scmp.eq.s32.totalorder %s11, 0
    %p45 = por %p43, %p44
    %p46 = scmp.ne.s32.totalorder %s35, %s38
    %p47 = scmp.eq.s32.totalorder %s16, 1
    %p48 = por %p46, %p47
    %p49 = scmp.ne.s32.totalorder %s38, %s39
    %p50 = scmp.eq.s32.totalorder %s16, 0
    %p51 = por %p49, %p50
    %p52 = scmp.ne.s32.totalorder %s38, %s39
    %p53 = scmp.eq.s32.totalorder %s17, 1
    %p54 = por %p52, %p53
    %p56 = scmp.ne.s32.totalorder %s39, %s55
    %p57 = scmp.eq.s32.totalorder %s17, 0
    %p58 = por %p56, %p57
    %s59 = ssub.s32 %s18, %s30
    %s60 = ssub.s32 %s19, %s26
    %s61 = sor.u32 %s59, %s60
    %p62 = scmp.eq.s32.totalorder %s61, 0
    %s64 = sadd.s32 %s63, 1
    %s65 = scalar_select %p62, %s63, %s64
    %p68 = pneg %p62
    %p69 = scmp.eq.s32.totalorder %s11, 1
    %p70 = por %p68, %p69
    %p71 = scmp.ne.s32.totalorder %s63, %s66
    %p72 = scmp.eq.s32.totalorder %s11, 0
    %p73 = por %p71, %p72
    %p74 = scmp.ne.s32.totalorder %s63, %s66
    %p75 = scmp.eq.s32.totalorder %s16, 1
    %p76 = por %p74, %p75
    %p77 = scmp.ne.s32.totalorder %s66, %s67
    %p78 = scmp.eq.s32.totalorder %s16, 0
    %p79 = por %p77, %p78
    %p80 = scmp.ne.s32.totalorder %s66, %s67
    %p81 = scmp.eq.s32.totalorder %s17, 1
    %p82 = por %p80, %p81
    %p84 = scmp.ne.s32.totalorder %s67, %s83
    %p85 = scmp.eq.s32.totalorder %s17, 0
    %p86 = por %p84, %p85
    %s88 = sadd.s32 %s87, 1
    %p91 = scmp.eq.s32.totalorder %s11, 1
    %p92 = scmp.ne.s32.totalorder %s87, %s89
    %p93 = scmp.eq.s32.totalorder %s11, 0
    %p94 = por %p92, %p93
    %p95 = scmp.ne.s32.totalorder %s87, %s89
    %p96 = scmp.eq.s32.totalorder %s16, 1
    %p97 = por %p95, %p96
    %p98 = scmp.ne.s32.totalorder %s89, %s90
    %p99 = scmp.eq.s32.totalorder %s16, 0
    %p100 = por %p98, %p99
    %p101 = scmp.ne.s32.totalorder %s89, %s90
    %p102 = scmp.eq.s32.totalorder %s17, 1
    %p103 = por %p101, %p102
    %p105 = scmp.ne.s32.totalorder %s90, %s104
    %p106 = scmp.eq.s32.totalorder %s17, 0
    %p107 = por %p105, %p106
    %s109 = sadd.s32 %s108, 1
    %p112 = scmp.eq.s32.totalorder %s11, 1
    %p113 = scmp.ne.s32.totalorder %s108, %s110
    %p114 = scmp.eq.s32.totalorder %s11, 0
    %p115 = por %p113, %p114
    %p116 = scmp.ne.s32.totalorder %s108, %s110
    %p117 = scmp.eq.s32.totalorder %s16, 1
    %p118 = por %p116, %p117
    %p119 = scmp.ne.s32.totalorder %s110, %s111
    %p120 = scmp.eq.s32.totalorder %s16, 0
    %p121 = por %p119, %p120
    %p122 = scmp.ne.s32.totalorder %s110, %s111
    %p123 = scmp.eq.s32.totalorder %s17, 1
    %p124 = por %p122, %p123
    %p126 = scmp.ne.s32.totalorder %s111, %s125
    %p127 = scmp.eq.s32.totalorder %s17, 0
    %p128 = por %p126, %p127
    %s130 = sadd.s32 %s129, 1
    %p133 = scmp.eq.s32.totalorder %s11, 1
    %p134 = scmp.ne.s32.totalorder %s129, %s131
    %p135 = scmp.eq.s32.totalorder %s11, 0
    %p136 = por %p134, %p135
    %p137 = scmp.ne.s32.totalorder %s129, %s131
    %p138 = scmp.eq.s32.totalorder %s16, 1
    %p139 = por %p137, %p138
    %p140 = scmp.ne.s32.totalorder %s131, %s132
    %p141 = scmp.eq.s32.totalorder %s16, 0
    %p142 = por %p140, %p141
    %p143 = scmp.ne.s32.totalorder %s131, %s132
    %p144 = scmp.eq.s32.totalorder %s17, 1
    %p145 = por %p143, %p144
    %p147 = scmp.ne.s32.totalorder %s132, %s146
    %p148 = scmp.eq.s32.totalorder %s17, 0
    %p149 = por %p147, %p148
    %s150 = ssub.s32 %s18, %s30
    %s151 = ssub.s32 %s19, %s26
    %s152 = sor.u32 %s150, %s151
    %p153 = scmp.eq.s32.totalorder %s152, 0
    %s155 = sadd.s32 %s154, 1
    %s156 = scalar_select %p153, %s154, %s155
    %p159 = pneg %p153
    %p160 = scmp.eq.s32.totalorder %s11, 1
    %p161 = por %p159, %p160
    %p162 = scmp.ne.s32.totalorder %s154, %s157
    %p163 = scmp.eq.s32.totalorder %s11, 0
    %p164 = por %p162, %p163
    %p165 = scmp.ne.s32.totalorder %s154, %s157
    %p166 = scmp.eq.s32.totalorder %s16, 1
    %p167 = por %p165, %p166
    %p168 = scmp.ne.s32.totalorder %s157, %s158
    %p169 = scmp.eq.s32.totalorder %s16, 0
    %p170 = por %p168, %p169
    %p171 = scmp.ne.s32.totalorder %s157, %s158
    %p172 = scmp.eq.s32.totalorder %s17, 1
    %p173 = por %p171, %p172
    %p175 = scmp.ne.s32.totalorder %s158, %s174
    %p176 = scmp.eq.s32.totalorder %s17, 0
    %p177 = por %p175, %p176
    %p178 = scmp.le.s32.totalorder 1, %s11
    %p179 = scmp.lt.s32.totalorder %s11, 3
    %p180 = pnand %p178, %p179
    %p181 = pneg %p180
    // Predicated region
    $region9: #{cat_forward.1} parent=5 // pred_check
      _
    $region10: #{cat_forward.1} parent=5 // pred_check_branch
      %183 = sbr.rel (%p180) target = $region12
    $region11: #{cat_forward.1} parent=5 // pred_region
      %s184 = ssub.s32 %s11, 1
      // Predicated region
      $region13: #{cat_forward.1} parent=11 // pred_check
        %p185 = pneg %p100
      $region14: #{cat_forward.1} parent=11 // pred_check_branch
        %187 = sbr.rel (%p185) target = $region16
      $region15: #{cat_forward.1} parent=11 // pred_region
        _
      $region16: #{cat_forward.1} parent=11 // pred_fallthru
        _
      // Predicated region
      $region17: #{cat_forward.1} parent=11 // pred_check
        %p188 = pneg %p121
      $region18: #{cat_forward.1} parent=11 // pred_check_branch
        %190 = sbr.rel (%p188) target = $region20
      $region19: #{cat_forward.1} parent=11 // pred_region
        _
      $region20: #{cat_forward.1} parent=11 // pred_fallthru
        _
      // Predicated region
      $region21: #{cat_forward.1} parent=11 // pred_check
        %p191 = pneg %p142
      $region22: #{cat_forward.1} parent=11 // pred_check_branch
        %193 = sbr.rel (%p191) target = $region24
      $region23: #{cat_forward.1} parent=11 // pred_region
        _
      $region24: #{cat_forward.1} parent=11 // pred_fallthru
        _
    $region12: #{cat_forward.1} parent=5 // pred_fallthru
      _
    %p194 = scmp.lt.s32.totalorder %s11, 2
    // Predicated region
    $region25: #{cat_forward.1} parent=5 // pred_check
      %p195 = pneg %p194
    $region26: #{cat_forward.1} parent=5 // pred_check_branch
      %197 = sbr.rel (%p195) target = $region28
    $region27: #{cat_forward.1} parent=5 // pred_region
      // Predicated region
      $region29: #{cat_forward.1} parent=27 // pred_check
        %p198 = pneg %p45
      $region30: #{cat_forward.1} parent=27 // pred_check_branch
        %200 = sbr.rel (%p198) target = $region32
      $region31: #{cat_forward.1} parent=27 // pred_region
        %p201 = scmp.lt.s32.totalorder %s18, 1
        %s202 = scalar_select %p201, %s18, 1
        %p203 = scmp.lt.s32.totalorder %s19, 0
        %s204 = scalar_select %p203, %s19, 0
        %s205 = sadd.s32 %s204, %s202
        %s206 = smul.addr %s205, 4
        %s207 = scalar_lea.vmem %s0, %s206
      $region32: #{cat_forward.1} parent=27 // pred_fallthru
        _
      // Predicated region
      $region33: #{cat_forward.1} parent=27 // pred_check
        %p208 = pneg %p73
      $region34: #{cat_forward.1} parent=27 // pred_check_branch
        %210 = sbr.rel (%p208) target = $region36
      $region35: #{cat_forward.1} parent=27 // pred_region
        %p211 = scmp.lt.s32.totalorder %s18, 1
        %s212 = scalar_select %p211, %s18, 1
        %p213 = scmp.lt.s32.totalorder %s19, 0
        %s214 = scalar_select %p213, %s19, 0
        %s215 = sadd.s32 %s214, %s212
        %s216 = smul.addr %s215, 8
        %s217 = scalar_lea.vmem %s1, %s216
      $region36: #{cat_forward.1} parent=27 // pred_fallthru
        _
    $region28: #{cat_forward.1} parent=5 // pred_fallthru
      _
    %p218 = scmp.le.s32.totalorder 1, %s11
    %p219 = scmp.lt.s32.totalorder %s11, 3
    %p220 = pnand %p218, %p219
    %p221 = pneg %p220
    // Predicated region
    $region37: #{cat_forward.1} parent=5 // pred_check
      _
    $region38: #{cat_forward.1} parent=5 // pred_check_branch
      %223 = sbr.rel (%p220) target = $region40
    $region39: #{cat_forward.1} parent=5 // pred_region
      %s224 = ssub.s32 %s11, 1
      %p225 = scmp.lt.s32.totalorder %s20, 1
      %s226 = scalar_select %p225, %s20, 1
      %p227 = scmp.lt.s32.totalorder %s21, 0
      %s228 = scalar_select %p227, %s21, 0
      %s229 = sadd.s32 %s228, %s226
      %s230 = smul.addr %s229, 4
      %s231 = scalar_lea.vmem %s0, %s230
      %p232 = pneg %p51
      %p233 = pneg %p48
      %p234 = scmp.lt.s32.totalorder %s20, 1
      %s235 = scalar_select %p234, %s20, 1
      %p236 = scmp.lt.s32.totalorder %s21, 0
      %s237 = scalar_select %p236, %s21, 0
      %s238 = sadd.s32 %s237, %s235
      %s239 = smul.addr %s238, 8
      %s240 = scalar_lea.vmem %s1, %s239
      %p241 = pneg %p79
      %p242 = pneg %p76
      %p243 = pneg %p100
      %p244 = pneg %p97
      %p245 = pneg %p121
      %p246 = pneg %p118
      %p247 = pneg %p142
      %p248 = pneg %p139
      %p249 = pneg %p170
      %p250 = pneg %p167
      %p251 = scmp.lt.s32.totalorder %s20, 1
      %s252 = scalar_select %p251, %s20, 1
      %p253 = scmp.lt.s32.totalorder %s21, 0
      %s254 = scalar_select %p253, %s21, 0
      %s255 = sadd.s32 %s254, %s252
      %s256 = smul.addr %s255, 8
      %s257 = scalar_lea.vmem %s5, %s256
      %p258 = scmp.lt.s32.totalorder %s20, 1
      %s259 = scalar_select %p258, %s20, 1
      %p260 = scmp.lt.s32.totalorder %s21, 0
      %s261 = scalar_select %p260, %s21, 0
      %s262 = sadd.s32 %s261, %s259
      %s263 = smul.addr %s262, 4
      %s264 = scalar_lea.vmem %s0, %s263
      %p265 = scmp.lt.s32.totalorder %s20, 1
      %s266 = scalar_select %p265, %s20, 1
      %p267 = scmp.lt.s32.totalorder %s21, 0
      %s268 = scalar_select %p267, %s21, 0
      %s269 = sadd.s32 %s268, %s266
      %s270 = smul.addr %s269, 8
      %s271 = scalar_lea.vmem %s1, %s270
      %p272 = scmp.lt.s32.totalorder %s20, 1
      %s273 = scalar_select %p272, %s20, 1
      %p274 = scmp.lt.s32.totalorder %s21, 0
      %s275 = scalar_select %p274, %s21, 0
      %s276 = sadd.s32 %s275, %s273
      %s277 = smul.addr %s276, 8
      %s278 = scalar_lea.vmem %s5, %s277
      %v279 = vld [vmem:[%s2] sm:$0xff]
      %v280 = vld [vmem:[%s264] sm:$0xf]
      %v281 = vld [vmem:[%s3] sm:$0xff]
      %v282 = vld [vmem:[%s271] sm:$0xff]
      %vm283 = vcmask 64512
      %v285 = vsel %vm283, %v281, 0
      %287 = vmatprep.subr.mxu0 0.0
      %288 = vmatpush1.msra.mxu0 %v282
      %289 = vmatprep.subr.mxu0 0.0
      %290 = vmatpush1.msra.mxu0 0.0
      %291 = vmatprep.subr.mxu0 0.0
      %292 = vmatpush1.msra.mxu0 0.0
      %293 = vmatprep.subr.mxu0 0.0
      %294 = vmatpush1.msra.mxu0 0.0
      %295 = vmatprep.subr.mxu0 0.0
      %296 = vmatpush1.msra.mxu0 0.0
      %297 = vmatprep.subr.mxu0 0.0
      %298 = vmatpush1.msra.mxu0 0.0
      %299 = vmatprep.subr.mxu0 0.0
      %300 = vmatpush1.msra.mxu0 0.0
      %301 = vmatprep.subr.mxu0 0.0
      %302 = vmatpush1.msra.mxu0 0.0
      %303 = vmatprep.subr.mxu0 0.0
      %304 = vmatpush1.msra.mxu0 0.0
      %305 = vmatprep.subr.mxu0 0.0
      %306 = vmatpush1.msra.mxu0 0.0
      %307 = vmatprep.subr.mxu0 0.0
      %308 = vmatpush1.msra.mxu0 0.0
      %309 = vmatprep.subr.mxu0 0.0
      %310 = vmatpush1.msra.mxu0 0.0
      %311 = vmatprep.subr.mxu0 0.0
      %312 = vmatpush1.msra.mxu0 0.0
      %313 = vmatprep.subr.mxu0 0.0
      %314 = vmatpush1.msra.mxu0 0.0
      %315 = vmatprep.subr.mxu0 0.0
      %316 = vmatpush1.msra.mxu0 0.0
      %317 = vmatprep.subr.mxu0 0.0
      %318 = vmatpush1.msra.mxu0 0.0
      %319 = vmatprep.subr.mxu0 0.0
      %320 = vmatpush1.msra.mxu0 0.0
      %321 = vmatprep.subr.mxu0 0.0
      %322 = vmatpush1.msra.mxu0 0.0
      %323 = vmatprep.subr.mxu0 0.0
      %324 = vmatpush1.msra.mxu0 0.0
      %325 = vmatprep.subr.mxu0 0.0
      %326 = vmatpush1.msra.mxu0 0.0
      %327 = vmatprep.subr.mxu0 0.0
      %328 = vmatpush1.msra.mxu0 0.0
      %329 = vmatprep.subr.mxu0 0.0
      %330 = vmatpush1.msra.mxu0 0.0
      %331 = vmatprep.subr.mxu0 0.0
      %332 = vmatpush1.msra.mxu0 0.0
      %333 = vmatprep.subr.mxu0 0.0
      %334 = vmatpush1.msra.mxu0 0.0
      %335 = vmatprep.subr.mxu0 0.0
      %336 = vmatpush1.msra.mxu0 0.0
      %337 = vmatprep.subr.mxu0 0.0
      %338 = vmatpush1.msra.mxu0 0.0
      %339 = vmatprep.subr.mxu0 0.0
      %340 = vmatpush1.msra.mxu0 0.0
      %341 = vmatprep.subr.mxu0 0.0
      %342 = vmatpush1.msra.mxu0 0.0
      %343 = vmatprep.subr.mxu0 0.0
      %344 = vmatpush1.msra.mxu0 0.0
      %345 = vmatprep.subr.mxu0 0.0
      %346 = vmatpush1.msra.mxu0 0.0
      %347 = vmatprep.subr.mxu0 0.0
      %348 = vmatpush1.msra.mxu0 0.0
      %349 = vmatprep.subr.mxu0 0.0
      %350 = vmatpush1.msra.mxu0 0.0
      %351 = vmatprep.mubr.f32.mxu0 0.0
      %352 = vmatmul.mubr.f32.gmra.mrb[0].mxu0 %v285
      %v353 = vpop.f32.mrb[0].mxu0
      %v354 = vadd.f32 0.0, %v353
      %v355 = vpop.f32.mrb[0].mxu0
      %356 = vdwg.mxu0
      %vm357 = vcmask 31744
      %v359 = vsel %vm357, %v279, 0
      %vm361 = vcmask 1043456
      %v363 = vsel %vm361, %v280, 0
      %365 = vmatprep.subr.mxu0 0.0
      %366 = vmatpush1.msra.mxu0 %v363
      %367 = vmatprep.subr.mxu0 0.0
      %368 = vmatpush1.msra.mxu0 0.0
      %369 = vmatprep.subr.mxu0 0.0
      %370 = vmatpush1.msra.mxu0 0.0
      %371 = vmatprep.subr.mxu0 0.0
      %372 = vmatpush1.msra.mxu0 0.0
      %373 = vmatprep.subr.mxu0 0.0
      %374 = vmatpush1.msra.mxu0 0.0
      %375 = vmatprep.subr.mxu0 0.0
      %376 = vmatpush1.msra.mxu0 0.0
      %377 = vmatprep.subr.mxu0 0.0
      %378 = vmatpush1.msra.mxu0 0.0
      %379 = vmatprep.subr.mxu0 0.0
      %380 = vmatpush1.msra.mxu0 0.0
      %381 = vmatprep.subr.mxu0 0.0
      %382 = vmatpush1.msra.mxu0 0.0
      %383 = vmatprep.subr.mxu0 0.0
      %384 = vmatpush1.msra.mxu0 0.0
      %385 = vmatprep.subr.mxu0 0.0
      %386 = vmatpush1.msra.mxu0 0.0
      %387 = vmatprep.subr.mxu0 0.0
      %388 = vmatpush1.msra.mxu0 0.0
      %389 = vmatprep.subr.mxu0 0.0
      %390 = vmatpush1.msra.mxu0 0.0
      %391 = vmatprep.subr.mxu0 0.0
      %392 = vmatpush1.msra.mxu0 0.0
      %393 = vmatprep.subr.mxu0 0.0
      %394 = vmatpush1.msra.mxu0 0.0
      %395 = vmatprep.subr.mxu0 0.0
      %396 = vmatpush1.msra.mxu0 0.0
      %397 = vmatprep.subr.mxu0 0.0
      %398 = vmatpush1.msra.mxu0 0.0
      %399 = vmatprep.subr.mxu0 0.0
      %400 = vmatpush1.msra.mxu0 0.0
      %401 = vmatprep.subr.mxu0 0.0
      %402 = vmatpush1.msra.mxu0 0.0
      %403 = vmatprep.subr.mxu0 0.0
      %404 = vmatpush1.msra.mxu0 0.0
      %405 = vmatprep.subr.mxu0 0.0
      %406 = vmatpush1.msra.mxu0 0.0
      %407 = vmatprep.subr.mxu0 0.0
      %408 = vmatpush1.msra.mxu0 0.0
      %409 = vmatprep.subr.mxu0 0.0
      %410 = vmatpush1.msra.mxu0 0.0
      %411 = vmatprep.subr.mxu0 0.0
      %412 = vmatpush1.msra.mxu0 0.0
      %413 = vmatprep.subr.mxu0 0.0
      %414 = vmatpush1.msra.mxu0 0.0
      %415 = vmatprep.subr.mxu0 0.0
      %416 = vmatpush1.msra.mxu0 0.0
      %417 = vmatprep.subr.mxu0 0.0
      %418 = vmatpush1.msra.mxu0 0.0
      %419 = vmatprep.subr.mxu0 0.0
      %420 = vmatpush1.msra.mxu0 0.0
      %421 = vmatprep.subr.mxu0 0.0
      %422 = vmatpush1.msra.mxu0 0.0
      %423 = vmatprep.subr.mxu0 0.0
      %424 = vmatpush1.msra.mxu0 0.0
      %425 = vmatprep.subr.mxu0 0.0
      %426 = vmatpush1.msra.mxu0 0.0
      %427 = vmatprep.subr.mxu0 0.0
      %428 = vmatpush1.msra.mxu0 0.0
      %429 = vmatprep.mubr.f32.mxu0 0.0
      %430 = vmatmul.mubr.f32.gmra.mrb[0].mxu0 %v359
      %v431 = vpop.f32.mrb[0].mxu0
      %v432 = vadd.f32 %v354, %v431
      %v433 = vpop.f32.mrb[0].mxu0
      %434 = vdwg.mxu0
      %v435 = vld [vmem:[%s4] sm:$0xff]
      %437 = vset.pattern.permute.xlu0 0
      %438 = vperm.xlu0 %437, %v435
      %v439 = vpop.permute.xlu0 %438
      %v441 = vadd.f32 %v432, %v439
      %vm442 = vcmask 523264
      %443 = vst.msk [vmem:[%s278] sm:$0xff] %vm442, %v441
      %p444 = scmp.lt.s32.totalorder %s20, 1
      %s445 = scalar_select %p444, %s20, 1
      %p446 = scmp.lt.s32.totalorder %s21, 0
      %s447 = scalar_select %p446, %s21, 0
      %s448 = sadd.s32 %s447, %s445
      %s449 = smul.addr %s448, 8
      %s450 = scalar_lea.vmem %s5, %s449
      // Predicated region
      $region41: #{cat_forward.1} parent=39 // pred_check
        %p451 = pneg %p167
      $region42: #{cat_forward.1} parent=39 // pred_check_branch
        %453 = sbr.rel (%p451) target = $region44
      $region43: #{cat_forward.1} parent=39 // pred_region
        _
      $region44: #{cat_forward.1} parent=39 // pred_fallthru
        _
    $region40: #{cat_forward.1} parent=5 // pred_fallthru
      _
    %p454 = scmp.le.s32.totalorder 2, %s11
    // Predicated region
    $region45: #{cat_forward.1} parent=5 // pred_check
      %p455 = pneg %p454
    $region46: #{cat_forward.1} parent=5 // pred_check_branch
      %457 = sbr.rel (%p455) target = $region48
    $region47: #{cat_forward.1} parent=5 // pred_region
      %s458 = ssub.s32 %s11, 2
      // Predicated region
      $region49: #{cat_forward.1} parent=47 // pred_check
        %p459 = pneg %p173
      $region50: #{cat_forward.1} parent=47 // pred_check_branch
        %461 = sbr.rel (%p459) target = $region52
      $region51: #{cat_forward.1} parent=47 // pred_region
        %p462 = scmp.lt.s32.totalorder %s22, 1
        %s463 = scalar_select %p462, %s22, 1
        %p464 = scmp.lt.s32.totalorder %s23, 0
        %s465 = scalar_select %p464, %s23, 0
        %s466 = sadd.s32 %s465, %s463
        %s467 = smul.addr %s466, 8
        %s468 = scalar_lea.vmem %s5, %s467
      $region52: #{cat_forward.1} parent=47 // pred_fallthru
        _
    $region48: #{cat_forward.1} parent=5 // pred_fallthru
      _
  $region6: #{cat_forward.1} parent=0 // loop_footer
    %s15 = sadd.s32 1, %s11
  $region7: #{cat_forward.1} parent=0 // loop_footer_branch
    %10 = sbr.rel target = $region3
  $region8: #{cat_forward.1} parent=0 // loop_exit
    _

</llo_original>
